<compile_context>
chip_gen: v5e
topology: v5e:2x2
jax: 0.10.0
libtpu: 0.0.40
codegen_flags: <defaults>
</compile_context>

<pallas_src>
import functools
import math

import jax
import jax.numpy as jnp
from jax import lax
from jax.experimental import pallas as pl
from jax.experimental.pallas import tpu as pltpu

LANES = 128
SUBLANES = 8
TILE_BYTES = 1 << 20          # ~1 MiB of input bytes per tensor per grid step
MAX_TILE_ROWS = 4096          # cap (keeps f32 compute temporaries bounded)


def _cdiv(a, b):
    return -(-a // b)


def _round_up(a, b):
    return _cdiv(a, b) * b


def _tensorcores_per_device():
    """2 on multi-TensorCore chips (v4 / v5p / v7x), else 1.  Safe fallback: 1."""
    try:
        kind = jax.devices()[0].device_kind.lower()
    except Exception:
        return 1
    return 2 if any(tag in kind for tag in ("v4", "v5p", "v7")) else 1


def _bce_blur_kernel(pred_ref, true_ref, out_ref, acc_ref, *,
                     inv_alpha, tail_block, tail_elems):
    """Grid = (num_shards, tiles_per_shard).  Each step folds one (T, 128) loss
    tile into an (8, 128) per-shard partial sum with pure VPU adds."""
    i = pl.program_id(1)

    @pl.when(i == 0)
    def _init():
        acc_ref[...] = jnp.zeros_like(acc_ref)

    x = pred_ref[...].astype(jnp.float32)
    y = true_ref[...].astype(jnp.float32)

    # Shared transcendental / VALU work:
    #   e = exp(-|x|) feeds both the numerically-stable BCE term and the sigmoid.
    #   1 + e feeds both log(1 + e) (== log1p(e), since e <= 1) and the reciprocal.
    e = jnp.exp(-jnp.abs(x))
    one_plus_e = 1.0 + e
    bce = jnp.maximum(x, 0.0) - x * y + jnp.log(one_plus_e)

    r = pl.reciprocal(one_plus_e, approx=False)   # sigmoid(|x|)
    p = jnp.where(x >= 0.0, r, 1.0 - r)           # sigmoid(x), stable for all x
    alpha_factor = 1.0 - jnp.exp((p - y - 1.0) * inv_alpha)
    loss = bce * alpha_factor

    t = loss.shape[0]

    def fold(vals):
        # Fold the (T, 128) tile into the (8, 128) vreg-shaped accumulator with
        # elementwise adds only (the single cross-lane reduce happens once, in
        # the wrapper).
        acc_ref[...] += vals.reshape(t // SUBLANES, SUBLANES, LANES).sum(axis=0)

    if tail_block is None:
        fold(loss)
    else:
        # Only the statically-known final grid block can contain out-of-range
        # elements (ragged tail / <128 pad zeros); every other step takes the
        # mask-free path.
        block = pl.program_id(0) * pl.num_programs(1) + i
        is_tail = block == tail_block

        @pl.when(jnp.logical_not(is_tail))
        def _full():
            fold(loss)

        @pl.when(is_tail)
        def _partial():
            idx = (lax.broadcasted_iota(jnp.int32, (t, LANES), 0) * LANES
                   + lax.broadcasted_iota(jnp.int32, (t, LANES), 1))
            fold(jnp.where(idx < tail_elems, loss, 0.0))

    @pl.when(i == pl.num_programs(1) - 1)
    def _finalize():
        out_ref[0] = acc_ref[...]


def bce_blur_with_logits_loss(pred, true, alpha=0.05):
    """Mean BCEBlur loss over all elements of pred/true (same shape)."""
    assert pred.shape == true.shape
    total = int(math.prod(pred.shape))
    assert total > 0, "mean over zero elements is undefined"

    in_itemsize = max(jnp.dtype(pred.dtype).itemsize, jnp.dtype(true.dtype).itemsize)

    # --- Flat element stream -> (rows, 128) slab (free reshape, no copy). ---
    # A copy (jnp.pad of <128 zeros) is only paid when total % 128 != 0; the
    # padded zeros are removed by the in-kernel tail mask.
    # TODO(synk): a fully copy-free path for totals that are not a multiple of
    # 128 would need 1-D blocks / manual DMA; all tile-level raggedness is
    # already handled in-kernel without any padding.
    rows = _cdiv(total, LANES)
    padded_total = rows * LANES

    def to_slab(a):
        flat = a.reshape(-1)                       # keep original dtype (bf16 ok)
        if padded_total != total:
            flat = jnp.pad(flat, (0, padded_total - total))   # zeros; masked in-kernel
        return flat.reshape(rows, LANES)

    pred_slab = to_slab(pred)
    true_slab = to_slab(true)

    # --- Grid geometry: ~1 MiB of input bytes per tensor per grid step; shard
    # --- across TensorCores only on multi-TC chips (v4 / v5p / v7x).
    budget_rows = (TILE_BYTES // (LANES * in_itemsize)) // SUBLANES * SUBLANES
    budget_rows = max(SUBLANES, min(budget_rows, MAX_TILE_ROWS))
    tile_rows = min(budget_rows, _round_up(rows, SUBLANES))
    num_blocks = _cdiv(rows, tile_rows)

    num_shards = 2 if (_tensorcores_per_device() >= 2 and num_blocks >= 2) else 1
    tiles_per_shard = _cdiv(num_blocks, num_shards)
    if num_shards > 1:
        # Re-balance tile size so the rectangular grid has no block that starts
        # past the end of the slab (only the final block may be partial).
        g = num_shards * tiles_per_shard
        tile_rows = _round_up(_cdiv(rows, g), SUBLANES)
        if (g - 1) * tile_rows >= rows:            # degenerate rounding; keep it simple
            num_shards = 1
            tiles_per_shard = _cdiv(rows, tile_rows)
    grid_blocks = num_shards * tiles_per_shard

    # --- Tail mask parameters (only the final block ever sees the mask). ---
    block_elems = tile_rows * LANES
    tail_elems = total - (grid_blocks - 1) * block_elems
    tail_block = None if tail_elems == block_elems else grid_blocks - 1

    kernel = functools.partial(
        _bce_blur_kernel,
        inv_alpha=1.0 / (float(alpha) + 1e-4),
        tail_block=tail_block,
        tail_elems=tail_elems,
    )

    out_bytes = num_shards * SUBLANES * LANES * 4
    cost = pl.CostEstimate(
        flops=16 * total,
        transcendentals=3 * total,
        bytes_accessed=total * (jnp.dtype(pred.dtype).itemsize
                                + jnp.dtype(true.dtype).itemsize) + out_bytes,
    )

    partials = pl.pallas_call(
        kernel,
        out_shape=jax.ShapeDtypeStruct((num_shards, SUBLANES, LANES), jnp.float32),
        grid_spec=pltpu.PrefetchScalarGridSpec(
            num_scalar_prefetch=0,
            grid=(num_shards, tiles_per_shard),
            in_specs=[
                pl.BlockSpec((tile_rows, LANES),
                             lambda s, i: (s * tiles_per_shard + i, 0)),
                pl.BlockSpec((tile_rows, LANES),
                             lambda s, i: (s * tiles_per_shard + i, 0)),
            ],
            out_specs=pl.BlockSpec((1, SUBLANES, LANES), lambda s, i: (s, 0, 0)),
            scratch_shapes=[pltpu.VMEM((SUBLANES, LANES), jnp.float32)],
        ),
        compiler_params=pltpu.CompilerParams(
            dimension_semantics=("parallel", "arbitrary"),
            vmem_limit_bytes=32 * 1024 * 1024,
        ),
        cost_estimate=cost,
    )(pred_slab, true_slab)

    # Single final cross-lane reduction + mean, outside the hot loop.
    return jnp.sum(partials) / jnp.float32(total)


def _reference(pred, true, alpha=0.05):
    x = pred.astype(jnp.float32)
    y = true.astype(jnp.float32)
    loss = jnp.maximum(x, 0.0) - x * y + jnp.log1p(jnp.exp(-jnp.abs(x)))
    p = jax.nn.sigmoid(x)
    dx = p - y
    alpha_factor = 1.0 - jnp.exp((dx - 1.0) / (alpha + 1e-4))
    return jnp.mean(loss * alpha_factor)


if __name__ == "__main__":
    key = jax.random.PRNGKey(0)
    k1, k2 = jax.random.split(key)

    def check(shape, alpha=0.05):
        pred = jax.random.normal(k1, shape, dtype=jnp.float32)
        true = (jax.random.uniform(k2, shape) > 0.5).astype(jnp.float32)
        out = jax.block_until_ready(bce_blur_with_logits_loss(pred, true, alpha))
        ref = _reference(pred, true, alpha)
        assert jnp.allclose(out, ref, atol=1e-5, rtol=1e-5), (shape, out, ref)

    # NCHW logits, as YOLOv5 would produce (pred = logits, true in {0,1}).
    check((2, 4, 16, 16))          # fully aligned: no pad, no mask
    check((2, 5, 128))             # lane-aligned but row-ragged: copy-free masked tail
    check((3, 5, 21, 17))          # not lane-aligned: tiny <128 pad + masked tail
    check((8, 4, 96, 96))          # multi-block accumulation / sharding path

    print("KERNEL_OK")
</pallas_src>

<mosaic_0001>
module attributes {stable_mosaic.version = 11 : i64} {
  func.func @_bce_blur_kernel(%arg0: i32, %arg1: i32, %arg2: memref<16x128xf32, #tpu.memory_space<vmem>>, %arg3: memref<16x128xf32, #tpu.memory_space<vmem>>, %arg4: memref<1x8x128xf32, #tpu.memory_space<vmem>>, %arg5: memref<8x128xf32, #tpu.memory_space<vmem>>) attributes {dimension_semantics = [#tpu.dimension_semantics<parallel>, #tpu.dimension_semantics<arbitrary>], iteration_bounds = array<i64: 1, 1>, scalar_prefetch = 0 : i64, scratch_operands = 1 : i64, tpu.core_type = #tpu.core_type<tc>, window_params = [{transform_indices = @transform_0, window_bounds = array<i64: 16, 128>}, {transform_indices = @transform_1, window_bounds = array<i64: 16, 128>}, {transform_indices = @transform_2, window_bounds = array<i64: 1, 8, 128>}]} {
    %c0_i32 = arith.constant 0 : i32
    %0 = arith.cmpi eq, %arg1, %c0_i32 : i32
    %1 = arith.extui %0 : i1 to i32
    %c0_i32_0 = arith.constant 0 : i32
    %2 = arith.cmpi ne, %1, %c0_i32_0 : i32
    scf.if %2 {
      %cst_18 = arith.constant 0.000000e+00 : f32
      %40 = vector.broadcast %cst_18 : f32 to vector<8x128xf32>
      %c0_19 = arith.constant 0 : index
      %c0_20 = arith.constant 0 : index
      %41 = vector.load %arg5[%c0_19, %c0_20] : memref<8x128xf32, #tpu.memory_space<vmem>>, vector<8x128xf32>
      tpu.vector_store %arg5[%c0_19, %c0_20], %40 {strides = array<i32>} : memref<8x128xf32, #tpu.memory_space<vmem>>, vector<8x128xf32>,
    } else {
    }
    %c0 = arith.constant 0 : index
    %c0_1 = arith.constant 0 : index
    %3 = vector.load %arg2[%c0, %c0_1] : memref<16x128xf32, #tpu.memory_space<vmem>>, vector<16x128xf32>
    %c0_2 = arith.constant 0 : index
    %c0_3 = arith.constant 0 : index
    %4 = vector.load %arg3[%c0_2, %c0_3] : memref<16x128xf32, #tpu.memory_space<vmem>>, vector<16x128xf32>
    %5 = math.absf %3 : vector<16x128xf32>
    %cst = arith.constant 0.000000e+00 : f32
    %6 = vector.broadcast %cst : f32 to vector<16x128xf32>
    %7 = arith.subf %6, %5 : vector<16x128xf32>
    %8 = math.exp %7 : vector<16x128xf32>
    %cst_4 = arith.constant 1.000000e+00 : f32
    %9 = vector.broadcast %cst_4 : f32 to vector<16x128xf32>
    %10 = arith.addf %9, %8 : vector<16x128xf32>
    %cst_5 = arith.constant 0.000000e+00 : f32
    %11 = vector.broadcast %cst_5 : f32 to vector<16x128xf32>
    %12 = arith.maximumf %3, %11 : vector<16x128xf32>
    %13 = arith.mulf %3, %4 : vector<16x128xf32>
    %14 = arith.subf %12, %13 : vector<16x128xf32>
    %15 = math.log %10 : vector<16x128xf32>
    %16 = arith.addf %14, %15 : vector<16x128xf32>
    %17 = tpu.reciprocal %10 : vector<16x128xf32> -> vector<16x128xf32>
    %cst_6 = arith.constant 0.000000e+00 : f32
    %18 = vector.broadcast %cst_6 : f32 to vector<16x128xf32>
    %19 = arith.cmpf oge, %3, %18 : vector<16x128xf32>
    %cst_7 = arith.constant 1.000000e+00 : f32
    %20 = vector.broadcast %cst_7 : f32 to vector<16x128xf32>
    %21 = arith.subf %20, %17 : vector<16x128xf32>
    %22 = arith.select %19, %17, %21 : vector<16x128xi1>, vector<16x128xf32>
    %23 = arith.subf %22, %4 : vector<16x128xf32>
    %cst_8 = arith.constant 1.000000e+00 : f32
    %24 = vector.broadcast %cst_8 : f32 to vector<16x128xf32>
    %25 = arith.subf %23, %24 : vector<16x128xf32>
    %cst_9 = arith.constant 19.9600792 : f32
    %26 = vector.broadcast %cst_9 : f32 to vector<16x128xf32>
    %27 = arith.mulf %25, %26 : vector<16x128xf32>
    %28 = math.exp %27 : vector<16x128xf32>
    %cst_10 = arith.constant 1.000000e+00 : f32
    %29 = vector.broadcast %cst_10 : f32 to vector<16x128xf32>
    %30 = arith.subf %29, %28 : vector<16x128xf32>
    %31 = arith.mulf %16, %30 : vector<16x128xf32>
    %c0_11 = arith.constant 0 : index
    %c0_12 = arith.constant 0 : index
    %32 = vector.load %arg5[%c0_11, %c0_12] : memref<8x128xf32, #tpu.memory_space<vmem>>, vector<8x128xf32>
    %33 = vector.shape_cast %31 : vector<16x128xf32> to vector<2x8x128xf32>
    %cst_13 = arith.constant dense<0.000000e+00> : vector<8x128xf32>
    %34 = vector.multi_reduction <add>, %33, %cst_13 [0] : vector<2x8x128xf32> to vector<8x128xf32>
    %35 = arith.addf %32, %34 : vector<8x128xf32>
    %c0_14 = arith.constant 0 : index
    %c0_15 = arith.constant 0 : index
    %36 = vector.load %arg5[%c0_14, %c0_15] : memref<8x128xf32, #tpu.memory_space<vmem>>, vector<8x128xf32>
    tpu.vector_store %arg5[%c0_14, %c0_15], %35 {strides = array<i32>} : memref<8x128xf32, #tpu.memory_space<vmem>>, vector<8x128xf32>,
    %c0_i32_16 = arith.constant 0 : i32
    %37 = arith.cmpi eq, %arg1, %c0_i32_16 : i32
    %38 = arith.extui %37 : i1 to i32
    %c0_i32_17 = arith.constant 0 : i32
    %39 = arith.cmpi ne, %38, %c0_i32_17 : i32
    scf.if %39 {
      %c0_18 = arith.constant 0 : index
      %c0_19 = arith.constant 0 : index
      %40 = vector.load %arg5[%c0_18, %c0_19] : memref<8x128xf32, #tpu.memory_space<vmem>>, vector<8x128xf32>
      %c0_20 = arith.constant 0 : index
      %c0_21 = arith.constant 0 : index
      %c0_22 = arith.constant 0 : index
      %41 = vector.load %arg4[%c0_20, %c0_21, %c0_22] : memref<1x8x128xf32, #tpu.memory_space<vmem>>, vector<1x8x128xf32>
      %42 = vector.shape_cast %41 : vector<1x8x128xf32> to vector<8x128xf32>
      %43 = vector.shape_cast %40 : vector<8x128xf32> to vector<1x8x128xf32>
      tpu.vector_store %arg4[%c0_20, %c0_21, %c0_22], %43 {strides = array<i32>} : memref<1x8x128xf32, #tpu.memory_space<vmem>>, vector<1x8x128xf32>,
    } else {
    }
    return
  }
  func.func @transform_0(%arg0: i32, %arg1: i32) -> (i32, i32) {
    %c1_i32 = arith.constant 1 : i32
    %0 = arith.muli %arg0, %c1_i32 : i32
    %1 = arith.addi %0, %arg1 : i32
    %c0_i32 = arith.constant 0 : i32
    %c0_i32_0 = arith.constant 0 : i32
    return %1, %c0_i32 : i32, i32
  }
  func.func @transform_1(%arg0: i32, %arg1: i32) -> (i32, i32) {
    %c1_i32 = arith.constant 1 : i32
    %0 = arith.muli %arg0, %c1_i32 : i32
    %1 = arith.addi %0, %arg1 : i32
    %c0_i32 = arith.constant 0 : i32
    %c0_i32_0 = arith.constant 0 : i32
    return %1, %c0_i32 : i32, i32
  }
  func.func @transform_2(%arg0: i32, %arg1: i32) -> (i32, i32, i32) {
    %c0_i32 = arith.constant 0 : i32
    %c0_i32_0 = arith.constant 0 : i32
    %c0_i32_1 = arith.constant 0 : i32
    return %arg0, %c0_i32, %c0_i32_0 : i32, i32, i32
  }
}

</mosaic_0001>

<llo_original>
// kernel: tpu_custom_call.1
$region0: #{tpu_custom_call.1}
  #allocation0 [shape = 'u32[]', space=smem, size = 0x4, offset = 0x4, fixed_abs, tag = 'smem constant byte address 0x4 - core index']
  #allocation1 [shape = 'u32[72,128]{1,0:T(1,128)}', space=vmem, size = 0x9000, scoped, tag = 'internal scratch']
  #allocation2 [shape = 'f32[8,128]{1,0:T(8,128)}', space=vmem, size = 0x1000, scoped, tag = 'scratch operand']
  %s0 = inlined_call_operand.hbm [shape: f32[16,128], index: 0, kind: input, shape index: {}]
  %s1 = inlined_call_operand.hbm [shape: f32[16,128], index: 1, kind: input, shape index: {}]
  %s2 = inlined_call_operand.hbm [shape: f32[1,8,128], index: 2, kind: output, shape index: {}]
  %s3 = sld [smem:[#allocation0]]
  $region34: #{tpu_custom_call.1} parent=0
    _
  %s5 = ssub.s32 1, %s3
  %s6 = scalar_select 0, %s5, %s3
  $region1: #{tpu_custom_call.1} parent=0
    #allocation3 [shape = 'u8[8192]{0}', space=vmem, size = 0x2000, scoped, tag = 'input window, operand 0, single buffered']
    #allocation4 [shape = 's32[1]{0}', space=sflag, size = 0x4, scoped, tag = 'scoped memory for tpu_custom_call.1']
    #allocation5 [shape = 's32[1]{0}', space=sflag, size = 0x4, scoped, tag = 'scoped memory for tpu_custom_call.1']
    #allocation6 [shape = 'u8[8192]{0}', space=vmem, size = 0x2000, scoped, tag = 'input window, operand 1, single buffered']
    #allocation7 [shape = 's32[1]{0}', space=sflag, size = 0x4, scoped, tag = 'scoped memory for tpu_custom_call.1']
    #allocation8 [shape = 'u8[4096]{0}', space=vmem, size = 0x1000, scoped, tag = 'output window, operand 0, single buffered']
    %7 = vsyncpa [#allocation4], 0
    %8 = vsyncpa [#allocation7], 0
    %9 = vsyncpa [#allocation5], 0
    // Predicated region
    $region2: #{tpu_custom_call.1} parent=1 // pred_check
      _
    $region3: #{tpu_custom_call.1} parent=1 // pred_check_branch
      %11 = sbr.rel (0) target = $region5
    $region4: #{tpu_custom_call.1} parent=1 // pred_region
      %s12 = sadd.s32 0, 0
      %s13 = smul.u32 2, %s12
      %15 = vsyncadd [#allocation4], 0
      %s16 = smul.addr %s13, 8
      %s17 = scalar_lea.hbm %s0, %s16
      %s18 = sshll.u32 %s17, 4
      %s19 = int_to_ptr.hbm [resolvable:$true] %s18
      %s20 = sshll.u32 [#allocation3], 4
      %s21 = int_to_ptr.vmem [resolvable:$true] %s20
      %26 = dma.hbm_to_vmem [thread:$0]  %s19, 256, %s21, [#allocation4], 128, 128, 8
    $region5: #{tpu_custom_call.1} parent=1 // pred_fallthru
      _
    // Predicated region
    $region6: #{tpu_custom_call.1} parent=1 // pred_check
      _
    $region7: #{tpu_custom_call.1} parent=1 // pred_check_branch
      %28 = sbr.rel (0) target = $region9
    $region8: #{tpu_custom_call.1} parent=1 // pred_region
      %s29 = sadd.s32 0, 0
      %s30 = smul.u32 2, %s29
      %32 = vsyncadd [#allocation7], 0
      %s33 = smul.addr %s30, 8
      %s34 = scalar_lea.hbm %s1, %s33
      %s35 = sshll.u32 %s34, 4
      %s36 = int_to_ptr.hbm [resolvable:$true] %s35
      %s37 = sshll.u32 [#allocation6], 4
      %s38 = int_to_ptr.vmem [resolvable:$true] %s37
      %43 = dma.hbm_to_vmem [thread:$0]  %s36, 256, %s38, [#allocation7], 128, 128, 8
    $region9: #{tpu_custom_call.1} parent=1 // pred_fallthru
      _
    // Predicated region
    $region10: #{tpu_custom_call.1} parent=1 // pred_check
      _
    $region11: #{tpu_custom_call.1} parent=1 // pred_check_branch
      %45 = sbr.rel (0) target = $region13
    $region12: #{tpu_custom_call.1} parent=1 // pred_region
      %47 = dma.done [#allocation4], 256
    $region13: #{tpu_custom_call.1} parent=1 // pred_fallthru
      _
    // Predicated region
    $region14: #{tpu_custom_call.1} parent=1 // pred_check
      _
    $region15: #{tpu_custom_call.1} parent=1 // pred_check_branch
      %49 = sbr.rel (0) target = $region17
    $region16: #{tpu_custom_call.1} parent=1 // pred_region
      %51 = dma.done [#allocation7], 256
    $region17: #{tpu_custom_call.1} parent=1 // pred_fallthru
      _
    %s52 = sadd.s32 0, 0
    %s53 = smul.u32 2, %s52
    %s54 = sadd.s32 0, 0
    %s55 = smul.u32 2, %s54
    %p56 = scmp.eq.s32.totalorder 0, 0
    // Predicated region
    $region18: #{tpu_custom_call.1} parent=1 // pred_check
      %p57 = pneg %p56
    $region19: #{tpu_custom_call.1} parent=1 // pred_check_branch
      %59 = sbr.rel (%p57) target = $region21
    $region20: #{tpu_custom_call.1} parent=1 // pred_region
      %60 = vst [vmem:[#allocation2] sm:$0xff] 0.0
    $region21: #{tpu_custom_call.1} parent=1 // pred_fallthru
      _
    %v61 = vld [vmem:[#allocation3] sm:$0xff]
    %v62 = vld [vmem:[#allocation3 + $0x8] sm:$0xff]
    %v63 = vld [vmem:[#allocation6] sm:$0xff]
    %v64 = vld [vmem:[#allocation6 + $0x8] sm:$0xff]
    %v65 = vand.u32 2147483647, %v61
    %v66 = vand.u32 2147483647, %v62
    %v67 = vsub.f32 0.0, %v65
    %v68 = vsub.f32 0.0, %v66
    %v69 = vmul.f32 %v67, 1.442695
    %v70 = vpow.pop %v69
    %v71 = vmul.f32 %v68, 1.442695
    %v72 = vpow.pop %v71
    %v73 = vadd.f32 %v70, 1.0
    %v74 = vadd.f32 %v72, 1.0
    %v75 = vmax.f32 %v61, 0.0
    %v76 = vmax.f32 %v62, 0.0
    %v77 = vmul.f32 %v61, %v63
    %v78 = vmul.f32 %v62, %v64
    %v79 = vsub.f32 %v75, %v77
    %v80 = vsub.f32 %v76, %v78
    %v81 = vlog2.pop %v73
    %v82 = vmul.f32 %v81, 0.6931472
    %v83 = vlog2.pop %v74
    %v84 = vmul.f32 %v83, 0.6931472
    %v85 = vadd.f32 %v79, %v82
    %v86 = vadd.f32 %v80, %v84
    %v87 = vrcp.pop %v73
    %v88 = vmul.f32 %v73, %v87
    %v89 = vsub.f32 1.0, %v88
    %v90 = vmul.f32 %v87, %v89
    %v91 = vadd.f32 %v87, %v90
    %vm92 = vweird.f32 %v73
    %vm93 = vweird.f32 %v87
    %vm94 = vmor %vm92, %vm93
    %v95 = vsel %vm94, %v87, %v91
    %v96 = vand.u32 2147483647, %v73
    %vm97 = vcmp.eq.f32.partialorder %v96, 8.507059e+37
    %v98 = vand.u32 %v73, 2147483648
    %v99 = vor.u32 1.1754944e-38, %v98
    %v100 = vsel %vm97, %v99, %v95
    %v101 = vrcp.pop %v74
    %v102 = vmul.f32 %v74, %v101
    %v103 = vsub.f32 1.0, %v102
    %v104 = vmul.f32 %v101, %v103
    %v105 = vadd.f32 %v101, %v104
    %vm106 = vweird.f32 %v74
    %vm107 = vweird.f32 %v101
    %vm108 = vmor %vm106, %vm107
    %v109 = vsel %vm108, %v101, %v105
    %v110 = vand.u32 2147483647, %v74
    %vm111 = vcmp.eq.f32.partialorder %v110, 8.507059e+37
    %v112 = vand.u32 %v74, 2147483648
    %v113 = vor.u32 1.1754944e-38, %v112
    %v114 = vsel %vm111, %v113, %v109
    %vm115 = vcmp.ge.f32.partialorder %v61, 0.0
    %vm116 = vcmp.ge.f32.partialorder %v62, 0.0
    %v117 = vsub.f32 1.0, %v100
    %v118 = vsub.f32 1.0, %v114
    %v119 = vsel %vm115, %v100, %v117
    %v120 = vsel %vm116, %v114, %v118
    %v121 = vsub.f32 %v119, %v63
    %v122 = vsub.f32 %v120, %v64
    %v123 = vsub.f32 %v121, 1.0
    %v124 = vsub.f32 %v122, 1.0
    %v125 = vmul.f32 %v123, 19.96008
    %v126 = vmul.f32 %v124, 19.96008
    %v127 = vmul.f32 %v125, 1.442695
    %v128 = vpow.pop %v127
    %v129 = vmul.f32 %v126, 1.442695
    %v130 = vpow.pop %v129
    %v131 = vsub.f32 1.0, %v128
    %v132 = vsub.f32 1.0, %v130
    %v133 = vmul.f32 %v85, %v131
    %v134 = vmul.f32 %v86, %v132
    %v135 = vld [vmem:[#allocation2] sm:$0xff]
    %v136 = vadd.f32 %v133, %v134
    %v137 = vadd.f32 %v135, %v136
    %138 = vst [vmem:[#allocation2] sm:$0xff] %v137
    // Predicated region
    $region22: #{tpu_custom_call.1} parent=1 // pred_check
      %p139 = pneg %p56
    $region23: #{tpu_custom_call.1} parent=1 // pred_check_branch
      %141 = sbr.rel (%p139) target = $region25
    $region24: #{tpu_custom_call.1} parent=1 // pred_region
      %v142 = vld [vmem:[#allocation2] sm:$0xff]
      %143 = vst [vmem:[#allocation8] sm:$0xff] %v142
    $region25: #{tpu_custom_call.1} parent=1 // pred_fallthru
      _
    // Predicated region
    $region26: #{tpu_custom_call.1} parent=1 // pred_check
      _
    $region27: #{tpu_custom_call.1} parent=1 // pred_check_branch
      %145 = sbr.rel (0) target = $region29
    $region28: #{tpu_custom_call.1} parent=1 // pred_region
      %147 = vsyncadd [#allocation5], 0
      %s149 = sshll.u32 [#allocation8], 4
      %s150 = int_to_ptr.vmem [resolvable:$true] %s149
      %s151 = sshll.u32 %s2, 4
      %s152 = int_to_ptr.hbm [resolvable:$true] %s151
      %154 = dma.vmem_to_hbm [thread:$0]  %s150, 128, %s152, [#allocation5]
    $region29: #{tpu_custom_call.1} parent=1 // pred_fallthru
      _
    // Predicated region
    $region30: #{tpu_custom_call.1} parent=1 // pred_check
      _
    $region31: #{tpu_custom_call.1} parent=1 // pred_check_branch
      %156 = sbr.rel (0) target = $region33
    $region32: #{tpu_custom_call.1} parent=1 // pred_region
      %158 = dma.done [#allocation5], 128
    $region33: #{tpu_custom_call.1} parent=1 // pred_fallthru
      _
    %159 = vsyncpa [#allocation4], 1
    %160 = vsyncpa [#allocation7], 1
    %161 = vsyncpa [#allocation5], 1

</llo_original>
